<compile_context>
chip_gen: v7x
topology: tpu7x:2x2x1
jax: 0.10.0
libtpu: 0.0.40
codegen_flags: <defaults>
</compile_context>

<pallas_src>
import functools

import jax
import jax.numpy as jnp
from jax import lax
from jax.experimental import pallas as pl
from jax.experimental.pallas import tpu as pltpu


def _gather_scale_kernel(ids_ref, emb_hbm, out_ref, buf, sems, *,
                         scale, tok_tile, chunk_rows, n_chunks, unroll):
    """Gather one tile of `tok_tile` embedding rows from HBM and scale them.

    ids_ref : SMEM (n_tok_padded,) int32     -- all token ids (scalar prefetch)
    emb_hbm : HBM  (vocab, emb_dim_p)        -- full table, never copied wholesale
    out_ref : VMEM (tok_tile, emb_dim_p)     -- output tile for this grid step
    buf     : VMEM (tok_tile, emb_dim_p)     -- DMA landing buffer (scratch)
    sems    : DMA semaphores, shape (n_chunks,) -- one shared sem per chunk
    """
    base = pl.program_id(0) * tok_tile

    def issue_chunk(c):
        # Unrolled descriptor-issue loop: `unroll` row gathers per fori step so
        # the scalar/misc VLIW slots co-issue across rows.
        def body(g, carry, c=c):
            r0 = c * chunk_rows + g * unroll
            for u in range(unroll):
                r = r0 + u
                tok = ids_ref[base + r]
                pltpu.make_async_copy(emb_hbm.at[tok], buf.at[r],
                                      sems.at[c]).start()
            return carry

        lax.fori_loop(0, chunk_rows // unroll, body, 0)

    def wait_chunk(c):
        # ONE bulk wait per chunk: every row copy of the chunk incremented
        # sems[c] by one row's bytes; a single descriptor sized as the union of
        # those row destinations decrements exactly the same amount.
        rows = pl.ds(c * chunk_rows, chunk_rows)
        pltpu.make_async_copy(buf.at[rows], buf.at[rows], sems.at[c]).wait()

    # 2-chunk-deep software pipeline within the step: transfers of chunk c+1 /
    # c+2 proceed while we wait/scale chunk c.
    issue_chunk(0)
    if n_chunks > 1:
        issue_chunk(1)
    for c in range(n_chunks):
        if c + 2 < n_chunks:
            issue_chunk(c + 2)
        wait_chunk(c)
        rows = pl.ds(c * chunk_rows, chunk_rows)
        out_ref[rows, :] = (buf[rows, :] * scale).astype(out_ref.dtype)


def standard_word_embedding(token_ids, emb_table, *, tok_tile=512):
    """token_ids: (seq_len, batch) int; emb_table: (vocab, emb_dim) float."""
    seq_len, batch = token_ids.shape
    vocab, emb_dim = emb_table.shape
    scale = float(emb_dim) ** 0.5

    # Lane-dense output: pad the embedding dim to a multiple of 128 so stores
    # are unmasked vst.  (Production tables would be stored pre-padded; on v5e
    # a bf16-stored table would additionally halve gather bytes -- kept f32
    # here to match nn.Embedding semantics exactly.)
    emb_dim_p = ((emb_dim + 127) // 128) * 128
    if emb_dim_p != emb_dim:
        emb_table_p = jnp.pad(emb_table, ((0, 0), (0, emb_dim_p - emb_dim)))
    else:
        emb_table_p = emb_table

    n_tok = seq_len * batch
    ids_flat = token_ids.reshape(n_tok).astype(jnp.int32)
    # nn.Embedding raises on out-of-range ids; here we clamp so the DMA gather
    # never walks outside the table.
    # TODO(synk): surface an explicit error for out-of-range ids instead of clamping.
    ids_flat = jnp.clip(ids_flat, 0, vocab - 1)

    # Token tile: multiple of 16 (safe for sub-32-bit sublane packing), large
    # default (512) to amortize the ~0.35us/step pipeline overhead, shrunk for
    # tiny inputs.  VMEM use = 3 * tok_tile * emb_dim_p * itemsize (double-
    # buffered out block + gather buf): ~6 MiB at tok_tile=512, D=1024 f32 --
    # comfortably inside v7x's 64 MiB physical / 32 MiB default scoped VMEM.
    tok_tile = int(tok_tile)
    tok_tile = min(tok_tile, -(-n_tok // 16) * 16)
    tok_tile = max(16, (tok_tile // 16) * 16)
    n_pad = -(-n_tok // tok_tile) * tok_tile
    if n_pad != n_tok:
        ids_flat = jnp.pad(ids_flat, (0, n_pad - n_tok))  # pad tokens -> row 0

    # Chunking for bulk DMA waits / in-step pipelining (one shared sem/chunk).
    chunk_rows = 64 if tok_tile % 64 == 0 else 16
    n_chunks = tok_tile // chunk_rows
    unroll = 8  # chunk_rows is always a multiple of 8

    kernel = functools.partial(
        _gather_scale_kernel, scale=scale, tok_tile=tok_tile,
        chunk_rows=chunk_rows, n_chunks=n_chunks, unroll=unroll)

    itemsize = jnp.dtype(emb_table.dtype).itemsize
    out_flat = pl.pallas_call(
        kernel,
        out_shape=jax.ShapeDtypeStruct((n_pad, emb_dim_p), emb_table.dtype),
        grid_spec=pltpu.PrefetchScalarGridSpec(
            num_scalar_prefetch=1,                       # ids -> SMEM
            grid=(n_pad // tok_tile,),
            in_specs=[
                pl.BlockSpec(memory_space=pl.ANY),       # table stays in HBM
            ],
            out_specs=pl.BlockSpec((tok_tile, emb_dim_p), lambda i, ids: (i, 0)),
            scratch_shapes=[
                pltpu.VMEM((tok_tile, emb_dim_p), emb_table.dtype),
                pltpu.SemaphoreType.DMA((n_chunks,)),
            ],
        ),
        compiler_params=pltpu.CompilerParams(
            # Token tiles are fully independent -> shard the grid across v7x's
            # two TensorCores; harmless no-op on single-core v5e/v6e.
            dimension_semantics=("parallel",),
        ),
        cost_estimate=pl.CostEstimate(
            flops=n_pad * emb_dim_p,
            transcendentals=0,
            bytes_accessed=2 * n_pad * emb_dim_p * itemsize + n_pad * 4,
        ),
    )(ids_flat, emb_table_p)

    return out_flat[:n_tok, :emb_dim].reshape(seq_len, batch, emb_dim)


if __name__ == "__main__":
    # Small synthetic shapes consistent with the module.
    vocab_size = 64
    emb_dim = 32
    seq_len = 8
    batch = 2

    key = jax.random.PRNGKey(0)
    k_emb, k_ids = jax.random.split(key)

    # Deterministic parameter init (nn.Embedding default ~ N(0, 1)).
    emb_table = jax.random.normal(k_emb, (vocab_size, emb_dim), dtype=jnp.float32)
    token_ids = jax.random.randint(k_ids, (seq_len, batch), 0, vocab_size,
                                   dtype=jnp.int32)

    out = standard_word_embedding(token_ids, emb_table)
    out = jax.block_until_ready(out)

    # Pure-JAX reference for correctness.
    ref = emb_table[token_ids] * (emb_dim ** 0.5)
    assert out.shape == (seq_len, batch, emb_dim)
    assert jnp.allclose(out, ref, atol=1e-5, rtol=1e-5), "mismatch vs reference"

    print("KERNEL_OK")
</pallas_src>

<mosaic_0001>
module attributes {stable_mosaic.version = 11 : i64} {
  func.func @_gather_scale_kernel(%arg0: i32, %arg1: memref<16xi32, #tpu.memory_space<smem>>, %arg2: memref<64x128xf32, #tpu.memory_space<any>>, %arg3: memref<16x128xf32, #tpu.memory_space<vmem>>, %arg4: memref<16x128xf32, #tpu.memory_space<vmem>>, %arg5: memref<1x!tpu.dma_semaphore, #tpu.memory_space<semaphore_mem>>) attributes {dimension_semantics = [#tpu.dimension_semantics<parallel>], iteration_bounds = array<i64: 1>, scalar_prefetch = 1 : i64, scratch_operands = 2 : i64, tpu.core_type = #tpu.core_type<tc>, window_params = [{}, {transform_indices = @transform_1, window_bounds = array<i64: 16, 128>}]} {
    %c16_i32 = arith.constant 16 : i32
    %0 = arith.muli %arg0, %c16_i32 : i32
    %c0_i32 = arith.constant 0 : i32
    %c2_i32 = arith.constant 2 : i32
    %1 = arith.addi %c0_i32, %c2_i32 : i32
    %c1_i32 = arith.constant 1 : i32
    scf.for %arg6 = %c0_i32 to %1 step %c1_i32  : i32 {
      %c8_i32 = arith.constant 8 : i32
      %10 = arith.muli %arg6, %c8_i32 : i32
      %c0_i32_9 = arith.constant 0 : i32
      %11 = arith.addi %c0_i32_9, %10 : i32
      %c0_i32_10 = arith.constant 0 : i32
      %12 = arith.addi %11, %c0_i32_10 : i32
      %13 = arith.addi %0, %12 : i32
      %14 = arith.index_cast %13 : i32 to index
      %15 = memref.load %arg1[%14] : memref<16xi32, #tpu.memory_space<smem>>
      %c0_i32_11 = arith.constant 0 : i32
      %c0_i32_12 = arith.constant 0 : i32
      %16 = tpu.memref_slice %arg2[%15, %c0_i32_12] : memref<64x128xf32, #tpu.memory_space<any>> -> memref<1x128xf32, #tpu.memory_space<any>>
      %17 = tpu.memref_squeeze %16 : memref<1x128xf32, #tpu.memory_space<any>> -> memref<128xf32, #tpu.memory_space<any>>
      %c0_i32_13 = arith.constant 0 : i32
      %18 = tpu.memref_slice %arg4[%12, %c0_i32_13] : memref<16x128xf32, #tpu.memory_space<vmem>> -> memref<1x128xf32, #tpu.memory_space<vmem>>
      %19 = tpu.memref_squeeze %18 : memref<1x128xf32, #tpu.memory_space<vmem>> -> memref<128xf32, #tpu.memory_space<vmem>>
      %20 = tpu.memref_slice %arg5[%c0_i32_11] : memref<1x!tpu.dma_semaphore, #tpu.memory_space<semaphore_mem>> -> memref<1x!tpu.dma_semaphore, #tpu.memory_space<semaphore_mem>>
      %21 = tpu.memref_squeeze %20 : memref<1x!tpu.dma_semaphore, #tpu.memory_space<semaphore_mem>> -> memref<!tpu.dma_semaphore, #tpu.memory_space<semaphore_mem>>
      tpu.enqueue_dma source(%17 : memref<128xf32, #tpu.memory_space<any>>) target(%19 : memref<128xf32, #tpu.memory_space<vmem>>) target_semaphore(%21 : memref<!tpu.dma_semaphore, #tpu.memory_space<semaphore_mem>>)
      %c1_i32_14 = arith.constant 1 : i32
      %22 = arith.addi %11, %c1_i32_14 : i32
      %23 = arith.addi %0, %22 : i32
      %24 = arith.index_cast %23 : i32 to index
      %25 = memref.load %arg1[%24] : memref<16xi32, #tpu.memory_space<smem>>
      %c0_i32_15 = arith.constant 0 : i32
      %c0_i32_16 = arith.constant 0 : i32
      %26 = tpu.memref_slice %arg2[%25, %c0_i32_16] : memref<64x128xf32, #tpu.memory_space<any>> -> memref<1x128xf32, #tpu.memory_space<any>>
      %27 = tpu.memref_squeeze %26 : memref<1x128xf32, #tpu.memory_space<any>> -> memref<128xf32, #tpu.memory_space<any>>
      %c0_i32_17 = arith.constant 0 : i32
      %28 = tpu.memref_slice %arg4[%22, %c0_i32_17] : memref<16x128xf32, #tpu.memory_space<vmem>> -> memref<1x128xf32, #tpu.memory_space<vmem>>
      %29 = tpu.memref_squeeze %28 : memref<1x128xf32, #tpu.memory_space<vmem>> -> memref<128xf32, #tpu.memory_space<vmem>>
      %30 = tpu.memref_slice %arg5[%c0_i32_15] : memref<1x!tpu.dma_semaphore, #tpu.memory_space<semaphore_mem>> -> memref<1x!tpu.dma_semaphore, #tpu.memory_space<semaphore_mem>>
      %31 = tpu.memref_squeeze %30 : memref<1x!tpu.dma_semaphore, #tpu.memory_space<semaphore_mem>> -> memref<!tpu.dma_semaphore, #tpu.memory_space<semaphore_mem>>
      tpu.enqueue_dma source(%27 : memref<128xf32, #tpu.memory_space<any>>) target(%29 : memref<128xf32, #tpu.memory_space<vmem>>) target_semaphore(%31 : memref<!tpu.dma_semaphore, #tpu.memory_space<semaphore_mem>>)
      %c2_i32_18 = arith.constant 2 : i32
      %32 = arith.addi %11, %c2_i32_18 : i32
      %33 = arith.addi %0, %32 : i32
      %34 = arith.index_cast %33 : i32 to index
      %35 = memref.load %arg1[%34] : memref<16xi32, #tpu.memory_space<smem>>
      %c0_i32_19 = arith.constant 0 : i32
      %c0_i32_20 = arith.constant 0 : i32
      %36 = tpu.memref_slice %arg2[%35, %c0_i32_20] : memref<64x128xf32, #tpu.memory_space<any>> -> memref<1x128xf32, #tpu.memory_space<any>>
      %37 = tpu.memref_squeeze %36 : memref<1x128xf32, #tpu.memory_space<any>> -> memref<128xf32, #tpu.memory_space<any>>
      %c0_i32_21 = arith.constant 0 : i32
      %38 = tpu.memref_slice %arg4[%32, %c0_i32_21] : memref<16x128xf32, #tpu.memory_space<vmem>> -> memref<1x128xf32, #tpu.memory_space<vmem>>
      %39 = tpu.memref_squeeze %38 : memref<1x128xf32, #tpu.memory_space<vmem>> -> memref<128xf32, #tpu.memory_space<vmem>>
      %40 = tpu.memref_slice %arg5[%c0_i32_19] : memref<1x!tpu.dma_semaphore, #tpu.memory_space<semaphore_mem>> -> memref<1x!tpu.dma_semaphore, #tpu.memory_space<semaphore_mem>>
      %41 = tpu.memref_squeeze %40 : memref<1x!tpu.dma_semaphore, #tpu.memory_space<semaphore_mem>> -> memref<!tpu.dma_semaphore, #tpu.memory_space<semaphore_mem>>
      tpu.enqueue_dma source(%37 : memref<128xf32, #tpu.memory_space<any>>) target(%39 : memref<128xf32, #tpu.memory_space<vmem>>) target_semaphore(%41 : memref<!tpu.dma_semaphore, #tpu.memory_space<semaphore_mem>>)
      %c3_i32 = arith.constant 3 : i32
      %42 = arith.addi %11, %c3_i32 : i32
      %43 = arith.addi %0, %42 : i32
      %44 = arith.index_cast %43 : i32 to index
      %45 = memref.load %arg1[%44] : memref<16xi32, #tpu.memory_space<smem>>
      %c0_i32_22 = arith.constant 0 : i32
      %c0_i32_23 = arith.constant 0 : i32
      %46 = tpu.memref_slice %arg2[%45, %c0_i32_23] : memref<64x128xf32, #tpu.memory_space<any>> -> memref<1x128xf32, #tpu.memory_space<any>>
      %47 = tpu.memref_squeeze %46 : memref<1x128xf32, #tpu.memory_space<any>> -> memref<128xf32, #tpu.memory_space<any>>
      %c0_i32_24 = arith.constant 0 : i32
      %48 = tpu.memref_slice %arg4[%42, %c0_i32_24] : memref<16x128xf32, #tpu.memory_space<vmem>> -> memref<1x128xf32, #tpu.memory_space<vmem>>
      %49 = tpu.memref_squeeze %48 : memref<1x128xf32, #tpu.memory_space<vmem>> -> memref<128xf32, #tpu.memory_space<vmem>>
      %50 = tpu.memref_slice %arg5[%c0_i32_22] : memref<1x!tpu.dma_semaphore, #tpu.memory_space<semaphore_mem>> -> memref<1x!tpu.dma_semaphore, #tpu.memory_space<semaphore_mem>>
      %51 = tpu.memref_squeeze %50 : memref<1x!tpu.dma_semaphore, #tpu.memory_space<semaphore_mem>> -> memref<!tpu.dma_semaphore, #tpu.memory_space<semaphore_mem>>
      tpu.enqueue_dma source(%47 : memref<128xf32, #tpu.memory_space<any>>) target(%49 : memref<128xf32, #tpu.memory_space<vmem>>) target_semaphore(%51 : memref<!tpu.dma_semaphore, #tpu.memory_space<semaphore_mem>>)
      %c4_i32 = arith.constant 4 : i32
      %52 = arith.addi %11, %c4_i32 : i32
      %53 = arith.addi %0, %52 : i32
      %54 = arith.index_cast %53 : i32 to index
      %55 = memref.load %arg1[%54] : memref<16xi32, #tpu.memory_space<smem>>
      %c0_i32_25 = arith.constant 0 : i32
      %c0_i32_26 = arith.constant 0 : i32
      %56 = tpu.memref_slice %arg2[%55, %c0_i32_26] : memref<64x128xf32, #tpu.memory_space<any>> -> memref<1x128xf32, #tpu.memory_space<any>>
      %57 = tpu.memref_squeeze %56 : memref<1x128xf32, #tpu.memory_space<any>> -> memref<128xf32, #tpu.memory_space<any>>
      %c0_i32_27 = arith.constant 0 : i32
      %58 = tpu.memref_slice %arg4[%52, %c0_i32_27] : memref<16x128xf32, #tpu.memory_space<vmem>> -> memref<1x128xf32, #tpu.memory_space<vmem>>
      %59 = tpu.memref_squeeze %58 : memref<1x128xf32, #tpu.memory_space<vmem>> -> memref<128xf32, #tpu.memory_space<vmem>>
      %60 = tpu.memref_slice %arg5[%c0_i32_25] : memref<1x!tpu.dma_semaphore, #tpu.memory_space<semaphore_mem>> -> memref<1x!tpu.dma_semaphore, #tpu.memory_space<semaphore_mem>>
      %61 = tpu.memref_squeeze %60 : memref<1x!tpu.dma_semaphore, #tpu.memory_space<semaphore_mem>> -> memref<!tpu.dma_semaphore, #tpu.memory_space<semaphore_mem>>
      tpu.enqueue_dma source(%57 : memref<128xf32, #tpu.memory_space<any>>) target(%59 : memref<128xf32, #tpu.memory_space<vmem>>) target_semaphore(%61 : memref<!tpu.dma_semaphore, #tpu.memory_space<semaphore_mem>>)
      %c5_i32 = arith.constant 5 : i32
      %62 = arith.addi %11, %c5_i32 : i32
      %63 = arith.addi %0, %62 : i32
      %64 = arith.index_cast %63 : i32 to index
      %65 = memref.load %arg1[%64] : memref<16xi32, #tpu.memory_space<smem>>
      %c0_i32_28 = arith.constant 0 : i32
      %c0_i32_29 = arith.constant 0 : i32
      %66 = tpu.memref_slice %arg2[%65, %c0_i32_29] : memref<64x128xf32, #tpu.memory_space<any>> -> memref<1x128xf32, #tpu.memory_space<any>>
      %67 = tpu.memref_squeeze %66 : memref<1x128xf32, #tpu.memory_space<any>> -> memref<128xf32, #tpu.memory_space<any>>
      %c0_i32_30 = arith.constant 0 : i32
      %68 = tpu.memref_slice %arg4[%62, %c0_i32_30] : memref<16x128xf32, #tpu.memory_space<vmem>> -> memref<1x128xf32, #tpu.memory_space<vmem>>
      %69 = tpu.memref_squeeze %68 : memref<1x128xf32, #tpu.memory_space<vmem>> -> memref<128xf32, #tpu.memory_space<vmem>>
      %70 = tpu.memref_slice %arg5[%c0_i32_28] : memref<1x!tpu.dma_semaphore, #tpu.memory_space<semaphore_mem>> -> memref<1x!tpu.dma_semaphore, #tpu.memory_space<semaphore_mem>>
      %71 = tpu.memref_squeeze %70 : memref<1x!tpu.dma_semaphore, #tpu.memory_space<semaphore_mem>> -> memref<!tpu.dma_semaphore, #tpu.memory_space<semaphore_mem>>
      tpu.enqueue_dma source(%67 : memref<128xf32, #tpu.memory_space<any>>) target(%69 : memref<128xf32, #tpu.memory_space<vmem>>) target_semaphore(%71 : memref<!tpu.dma_semaphore, #tpu.memory_space<semaphore_mem>>)
      %c6_i32 = arith.constant 6 : i32
      %72 = arith.addi %11, %c6_i32 : i32
      %73 = arith.addi %0, %72 : i32
      %74 = arith.index_cast %73 : i32 to index
      %75 = memref.load %arg1[%74] : memref<16xi32, #tpu.memory_space<smem>>
      %c0_i32_31 = arith.constant 0 : i32
      %c0_i32_32 = arith.constant 0 : i32
      %76 = tpu.memref_slice %arg2[%75, %c0_i32_32] : memref<64x128xf32, #tpu.memory_space<any>> -> memref<1x128xf32, #tpu.memory_space<any>>
      %77 = tpu.memref_squeeze %76 : memref<1x128xf32, #tpu.memory_space<any>> -> memref<128xf32, #tpu.memory_space<any>>
      %c0_i32_33 = arith.constant 0 : i32
      %78 = tpu.memref_slice %arg4[%72, %c0_i32_33] : memref<16x128xf32, #tpu.memory_space<vmem>> -> memref<1x128xf32, #tpu.memory_space<vmem>>
      %79 = tpu.memref_squeeze %78 : memref<1x128xf32, #tpu.memory_space<vmem>> -> memref<128xf32, #tpu.memory_space<vmem>>
      %80 = tpu.memref_slice %arg5[%c0_i32_31] : memref<1x!tpu.dma_semaphore, #tpu.memory_space<semaphore_mem>> -> memref<1x!tpu.dma_semaphore, #tpu.memory_space<semaphore_mem>>
      %81 = tpu.memref_squeeze %80 : memref<1x!tpu.dma_semaphore, #tpu.memory_space<semaphore_mem>> -> memref<!tpu.dma_semaphore, #tpu.memory_space<semaphore_mem>>
      tpu.enqueue_dma source(%77 : memref<128xf32, #tpu.memory_space<any>>) target(%79 : memref<128xf32, #tpu.memory_space<vmem>>) target_semaphore(%81 : memref<!tpu.dma_semaphore, #tpu.memory_space<semaphore_mem>>)
      %c7_i32 = arith.constant 7 : i32
      %82 = arith.addi %11, %c7_i32 : i32
      %83 = arith.addi %0, %82 : i32
      %84 = arith.index_cast %83 : i32 to index
      %85 = memref.load %arg1[%84] : memref<16xi32, #tpu.memory_space<smem>>
      %c0_i32_34 = arith.constant 0 : i32
      %c0_i32_35 = arith.constant 0 : i32
      %86 = tpu.memref_slice %arg2[%85, %c0_i32_35] : memref<64x128xf32, #tpu.memory_space<any>> -> memref<1x128xf32, #tpu.memory_space<any>>
      %87 = tpu.memref_squeeze %86 : memref<1x128xf32, #tpu.memory_space<any>> -> memref<128xf32, #tpu.memory_space<any>>
      %c0_i32_36 = arith.constant 0 : i32
      %88 = tpu.memref_slice %arg4[%82, %c0_i32_36] : memref<16x128xf32, #tpu.memory_space<vmem>> -> memref<1x128xf32, #tpu.memory_space<vmem>>
      %89 = tpu.memref_squeeze %88 : memref<1x128xf32, #tpu.memory_space<vmem>> -> memref<128xf32, #tpu.memory_space<vmem>>
      %90 = tpu.memref_slice %arg5[%c0_i32_34] : memref<1x!tpu.dma_semaphore, #tpu.memory_space<semaphore_mem>> -> memref<1x!tpu.dma_semaphore, #tpu.memory_space<semaphore_mem>>
      %91 = tpu.memref_squeeze %90 : memref<1x!tpu.dma_semaphore, #tpu.memory_space<semaphore_mem>> -> memref<!tpu.dma_semaphore, #tpu.memory_space<semaphore_mem>>
      tpu.enqueue_dma source(%87 : memref<128xf32, #tpu.memory_space<any>>) target(%89 : memref<128xf32, #tpu.memory_space<vmem>>) target_semaphore(%91 : memref<!tpu.dma_semaphore, #tpu.memory_space<semaphore_mem>>)
    }
    %c2_i32_0 = arith.constant 2 : i32
    %c0_i32_1 = arith.constant 0 : i32
    %c0_i32_2 = arith.constant 0 : i32
    %c0_i32_3 = arith.constant 0 : i32
    %2 = tpu.memref_slice %arg4[%c0_i32_2, %c0_i32_3] : memref<16x128xf32, #tpu.memory_space<vmem>> -> memref<16x128xf32, #tpu.memory_space<vmem>>
    %c0_i32_4 = arith.constant 0 : i32
    %c0_i32_5 = arith.constant 0 : i32
    %3 = tpu.memref_slice %arg4[%c0_i32_4, %c0_i32_5] : memref<16x128xf32, #tpu.memory_space<vmem>> -> memref<16x128xf32, #tpu.memory_space<vmem>>
    %4 = tpu.memref_slice %arg5[%c0_i32_1] : memref<1x!tpu.dma_semaphore, #tpu.memory_space<semaphore_mem>> -> memref<1x!tpu.dma_semaphore, #tpu.memory_space<semaphore_mem>>
    %5 = tpu.memref_squeeze %4 : memref<1x!tpu.dma_semaphore, #tpu.memory_space<semaphore_mem>> -> memref<!tpu.dma_semaphore, #tpu.memory_space<semaphore_mem>>
    tpu.wait_dma2 semaphore(%5 : memref<!tpu.dma_semaphore, #tpu.memory_space<semaphore_mem>>) src(%2 : memref<16x128xf32, #tpu.memory_space<vmem>>) dst(%3 : memref<16x128xf32, #tpu.memory_space<vmem>>)
    %c0 = arith.constant 0 : index
    %c0_6 = arith.constant 0 : index
    %6 = vector.load %arg4[%c0, %c0_6] : memref<16x128xf32, #tpu.memory_space<vmem>>, vector<16x128xf32>
    %cst = arith.constant 5.65685415 : f32
    %7 = vector.broadcast %cst : f32 to vector<16x128xf32>
    %8 = arith.mulf %6, %7 : vector<16x128xf32>
    %c0_7 = arith.constant 0 : index
    %c0_8 = arith.constant 0 : index
    %9 = vector.load %arg3[%c0_7, %c0_8] : memref<16x128xf32, #tpu.memory_space<vmem>>, vector<16x128xf32>
    tpu.vector_store %arg3[%c0_7, %c0_8], %8 {strides = array<i32>} : memref<16x128xf32, #tpu.memory_space<vmem>>, vector<16x128xf32>,
    return
  }
  func.func @transform_1(%arg0: i32, %arg1: memref<16xi32, #tpu.memory_space<smem>>) -> (i32, i32) {
    %c0_i32 = arith.constant 0 : i32
    %c0_i32_0 = arith.constant 0 : i32
    return %arg0, %c0_i32 : i32, i32
  }
}

</mosaic_0001>

<llo_original>
// kernel: tpu_custom_call.1
$region0: #{tpu_custom_call.1}
  #allocation0 [shape = 'u32[]', space=smem, size = 0x4, offset = 0x4, fixed_abs, tag = 'smem constant byte address 0x4 - core index']
  #allocation1 [shape = 'u32[144,128]{1,0:T(1,128)}', space=vmem, size = 0x12000, scoped, tag = 'internal scratch']
  #allocation2 [shape = 'f32[16,128]{1,0:T(8,128)}', space=vmem, size = 0x2000, scoped, tag = 'scratch operand']
  #allocation3 [shape = 's32[1]{0}', space=sflag, size = 0x4, scoped, tag = 'scratch operand']
  #allocation4 [shape = 's32[1]{0}', space=sflag, size = 0x4, scoped, tag = 'scoped memory for tpu_custom_call.1']
  #allocation5 [shape = 'u8[512]{0}', space=smem, size = 0x200, scoped, tag = 'prefetched SMEM operand 0']
  #allocation8 [shape = 's32[]', space=sflag, size = 0x4, offset = 0, fixed_abs, tag = 'sflag constant byte address 0x0 - dummy sync flag']
  #allocation9 [shape = 's32[]', space=sflag, size = 0x4, offset = 0, fixed_abs, tag = 'sflag constant byte address 0x0 - dummy sync flag']
  #allocation10 [shape = 'u32[]', space=smem, size = 0x4, offset = 0x44, fixed_abs, tag = 'smem constant byte address 0x44 - assertion arg 0']
  #allocation11 [shape = 'u32[]', space=smem, size = 0x4, offset = 0x48, fixed_abs, tag = 'smem constant byte address 0x48 - assertion arg 1']
  #allocation12 [shape = 's32[]', space=sflag, size = 0x4, offset = 0, fixed_abs, tag = 'sflag constant byte address 0x0 - dummy sync flag']
  #allocation13 [shape = 's32[]', space=sflag, size = 0x4, offset = 0, fixed_abs, tag = 'sflag constant byte address 0x0 - dummy sync flag']
  #allocation14 [shape = 's32[]', space=sflag, size = 0x4, offset = 0, fixed_abs, tag = 'sflag constant byte address 0x0 - dummy sync flag']
  #allocation15 [shape = 's32[]', space=sflag, size = 0x4, offset = 0, fixed_abs, tag = 'sflag constant byte address 0x0 - dummy sync flag']
  #allocation16 [shape = 's32[]', space=sflag, size = 0x4, offset = 0, fixed_abs, tag = 'sflag constant byte address 0x0 - dummy sync flag']
  #allocation17 [shape = 's32[]', space=sflag, size = 0x4, offset = 0, fixed_abs, tag = 'sflag constant byte address 0x0 - dummy sync flag']
  #allocation18 [shape = 's32[]', space=sflag, size = 0x4, offset = 0, fixed_abs, tag = 'sflag constant byte address 0x0 - dummy sync flag']
  #allocation19 [shape = 's32[]', space=sflag, size = 0x4, offset = 0, fixed_abs, tag = 'sflag constant byte address 0x0 - dummy sync flag']
  #allocation20 [shape = 's32[]', space=sflag, size = 0x4, offset = 0, fixed_abs, tag = 'sflag constant byte address 0x0 - dummy sync flag']
  #allocation21 [shape = 's32[]', space=sflag, size = 0x4, offset = 0, fixed_abs, tag = 'sflag constant byte address 0x0 - dummy sync flag']
  #allocation22 [shape = 's32[]', space=sflag, size = 0x4, offset = 0, fixed_abs, tag = 'sflag constant byte address 0x0 - dummy sync flag']
  #allocation23 [shape = 's32[]', space=sflag, size = 0x4, offset = 0, fixed_abs, tag = 'sflag constant byte address 0x0 - dummy sync flag']
  #allocation24 [shape = 's32[]', space=sflag, size = 0x4, offset = 0, fixed_abs, tag = 'sflag constant byte address 0x0 - dummy sync flag']
  #allocation25 [shape = 's32[]', space=sflag, size = 0x4, offset = 0, fixed_abs, tag = 'sflag constant byte address 0x0 - dummy sync flag']
  %s0 = inlined_call_operand.hbm [shape: s32[16], index: 0, kind: input, shape index: {}]
  %s1 = inlined_call_operand.hbm [shape: f32[64,128], index: 1, kind: input, shape index: {}]
  %s2 = inlined_call_operand.hbm [shape: f32[16,128], index: 2, kind: output, shape index: {}]
  %s3 = sld [smem:[#allocation0]]
  $region49: #{tpu_custom_call.1} parent=0
    _
  %s5 = ssub.s32 1, %s3
  %s6 = scalar_select 0, %s5, %s3
  %8 = dma.hbm_to_smem %s0, 16, [#allocation5], [#allocation4]
  %9 = dma.done [#allocation4], 16
  %10 = sfence
  $region1: #{tpu_custom_call.1} parent=0
    #allocation6 [shape = 'u8[8192]{0}', space=vmem, size = 0x2000, scoped, tag = 'output window, operand 0, single buffered']
    #allocation7 [shape = 's32[1]{0}', space=sflag, size = 0x4, scoped, tag = 'scoped memory for tpu_custom_call.1']
    %11 = vsyncpa [#allocation7], 0
    %s12 = smul.u32 0, 16
    loop: start=0, step=1, limit=2
    $region2: #{tpu_custom_call.1} parent=1 // loop_pre_header
      _
    $region3: #{tpu_custom_call.1} parent=1 // loop_header
      %s14 = sphi 0, %s18
      %p15 = scmp.ge.s32.totalorder %s14, 2
    $region4: #{tpu_custom_call.1} parent=1 // loop_header_branch
      %17 = sbr.rel (%p15) target = $region8
    $region5: #{tpu_custom_call.1} parent=1 // loop_body
      %s19 = smul.u32 %s14, 8
      %s20 = sadd.s32 %s12, %s19
      %s21 = sld [smem:[#allocation5 + %s20]]
      %s22 = smul.addr %s21, 16
      %s23 = scalar_lea.hbm %s1, %s22
      %s24 = scalar_lea.vmem [#allocation2], %s19
      // Predicated region
      $region9: #{tpu_custom_call.1} parent=5 // pred_check
        _
      $region10: #{tpu_custom_call.1} parent=5 // pred_check_branch
        %26 = sbr.rel target = $region12
      $region11: #{tpu_custom_call.1} parent=5 // pred_region
        %27 = sst [smem:[#allocation10]] [#allocation9]
        %28 = sst [smem:[#allocation11]] [#allocation8]
      $region12: #{tpu_custom_call.1} parent=5 // pred_fallthru
        _
      %30 = shalt.err (0)
      %s32 = sshll.u32 %s24, 4
      %s33 = int_to_ptr.vmem [resolvable:$true] %s32
      %35 = dma.hbm_to_vmem [thread:$0]  %s23, 16, %s33, [#allocation3]
      %s36 = sadd.s32 %s19, 1
      %s37 = sadd.s32 %s12, %s36
      %s38 = sld [smem:[#allocation5 + %s37]]
      %s39 = smul.addr %s38, 16
      %s40 = scalar_lea.hbm %s1, %s39
      %s41 = scalar_lea.vmem [#allocation2], %s36
      // Predicated region
      $region13: #{tpu_custom_call.1} parent=5 // pred_check
        _
      $region14: #{tpu_custom_call.1} parent=5 // pred_check_branch
        %43 = sbr.rel target = $region16
      $region15: #{tpu_custom_call.1} parent=5 // pred_region
        %44 = sst [smem:[#allocation10]] [#allocation13]
        %45 = sst [smem:[#allocation11]] [#allocation12]
      $region16: #{tpu_custom_call.1} parent=5 // pred_fallthru
        _
      %47 = shalt.err (0)
      %s49 = sshll.u32 %s41, 4
      %s50 = int_to_ptr.vmem [resolvable:$true] %s49
      %52 = dma.hbm_to_vmem [thread:$0]  %s40, 16, %s50, [#allocation3]
      %s53 = sadd.s32 %s19, 2
      %s54 = sadd.s32 %s12, %s53
      %s55 = sld [smem:[#allocation5 + %s54]]
      %s56 = smul.addr %s55, 16
      %s57 = scalar_lea.hbm %s1, %s56
      %s58 = scalar_lea.vmem [#allocation2], %s53
      // Predicated region
      $region17: #{tpu_custom_call.1} parent=5 // pred_check
        _
      $region18: #{tpu_custom_call.1} parent=5 // pred_check_branch
        %60 = sbr.rel target = $region20
      $region19: #{tpu_custom_call.1} parent=5 // pred_region
        %61 = sst [smem:[#allocation10]] [#allocation15]
        %62 = sst [smem:[#allocation11]] [#allocation14]
      $region20: #{tpu_custom_call.1} parent=5 // pred_fallthru
        _
      %64 = shalt.err (0)
      %s66 = sshll.u32 %s58, 4
      %s67 = int_to_ptr.vmem [resolvable:$true] %s66
      %69 = dma.hbm_to_vmem [thread:$0]  %s57, 16, %s67, [#allocation3]
      %s70 = sadd.s32 %s19, 3
      %s71 = sadd.s32 %s12, %s70
      %s72 = sld [smem:[#allocation5 + %s71]]
      %s73 = smul.addr %s72, 16
      %s74 = scalar_lea.hbm %s1, %s73
      %s75 = scalar_lea.vmem [#allocation2], %s70
      // Predicated region
      $region21: #{tpu_custom_call.1} parent=5 // pred_check
        _
      $region22: #{tpu_custom_call.1} parent=5 // pred_check_branch
        %77 = sbr.rel target = $region24
      $region23: #{tpu_custom_call.1} parent=5 // pred_region
        %78 = sst [smem:[#allocation10]] [#allocation17]
        %79 = sst [smem:[#allocation11]] [#allocation16]
      $region24: #{tpu_custom_call.1} parent=5 // pred_fallthru
        _
      %81 = shalt.err (0)
      %s83 = sshll.u32 %s75, 4
      %s84 = int_to_ptr.vmem [resolvable:$true] %s83
      %86 = dma.hbm_to_vmem [thread:$0]  %s74, 16, %s84, [#allocation3]
      %s87 = sadd.s32 %s19, 4
      %s88 = sadd.s32 %s12, %s87
      %s89 = sld [smem:[#allocation5 + %s88]]
      %s90 = smul.addr %s89, 16
      %s91 = scalar_lea.hbm %s1, %s90
      %s92 = scalar_lea.vmem [#allocation2], %s87
      // Predicated region
      $region25: #{tpu_custom_call.1} parent=5 // pred_check
        _
      $region26: #{tpu_custom_call.1} parent=5 // pred_check_branch
        %94 = sbr.rel target = $region28
      $region27: #{tpu_custom_call.1} parent=5 // pred_region
        %95 = sst [smem:[#allocation10]] [#allocation19]
        %96 = sst [smem:[#allocation11]] [#allocation18]
      $region28: #{tpu_custom_call.1} parent=5 // pred_fallthru
        _
      %98 = shalt.err (0)
      %s100 = sshll.u32 %s92, 4
      %s101 = int_to_ptr.vmem [resolvable:$true] %s100
      %103 = dma.hbm_to_vmem [thread:$0]  %s91, 16, %s101, [#allocation3]
      %s104 = sadd.s32 %s19, 5
      %s105 = sadd.s32 %s12, %s104
      %s106 = sld [smem:[#allocation5 + %s105]]
      %s107 = smul.addr %s106, 16
      %s108 = scalar_lea.hbm %s1, %s107
      %s109 = scalar_lea.vmem [#allocation2], %s104
      // Predicated region
      $region29: #{tpu_custom_call.1} parent=5 // pred_check
        _
      $region30: #{tpu_custom_call.1} parent=5 // pred_check_branch
        %111 = sbr.rel target = $region32
      $region31: #{tpu_custom_call.1} parent=5 // pred_region
        %112 = sst [smem:[#allocation10]] [#allocation21]
        %113 = sst [smem:[#allocation11]] [#allocation20]
      $region32: #{tpu_custom_call.1} parent=5 // pred_fallthru
        _
      %115 = shalt.err (0)
      %s117 = sshll.u32 %s109, 4
      %s118 = int_to_ptr.vmem [resolvable:$true] %s117
      %120 = dma.hbm_to_vmem [thread:$0]  %s108, 16, %s118, [#allocation3]
      %s121 = sadd.s32 %s19, 6
      %s122 = sadd.s32 %s12, %s121
      %s123 = sld [smem:[#allocation5 + %s122]]
      %s124 = smul.addr %s123, 16
      %s125 = scalar_lea.hbm %s1, %s124
      %s126 = scalar_lea.vmem [#allocation2], %s121
      // Predicated region
      $region33: #{tpu_custom_call.1} parent=5 // pred_check
        _
      $region34: #{tpu_custom_call.1} parent=5 // pred_check_branch
        %128 = sbr.rel target = $region36
      $region35: #{tpu_custom_call.1} parent=5 // pred_region
        %129 = sst [smem:[#allocation10]] [#allocation23]
        %130 = sst [smem:[#allocation11]] [#allocation22]
      $region36: #{tpu_custom_call.1} parent=5 // pred_fallthru
        _
      %132 = shalt.err (0)
      %s134 = sshll.u32 %s126, 4
      %s135 = int_to_ptr.vmem [resolvable:$true] %s134
      %137 = dma.hbm_to_vmem [thread:$0]  %s125, 16, %s135, [#allocation3]
      %s138 = sadd.s32 %s19, 7
      %s139 = sadd.s32 %s12, %s138
      %s140 = sld [smem:[#allocation5 + %s139]]
      %s141 = smul.addr %s140, 16
      %s142 = scalar_lea.hbm %s1, %s141
      %s143 = scalar_lea.vmem [#allocation2], %s138
      // Predicated region
      $region37: #{tpu_custom_call.1} parent=5 // pred_check
        _
      $region38: #{tpu_custom_call.1} parent=5 // pred_check_branch
        %145 = sbr.rel target = $region40
      $region39: #{tpu_custom_call.1} parent=5 // pred_region
        %146 = sst [smem:[#allocation10]] [#allocation25]
        %147 = sst [smem:[#allocation11]] [#allocation24]
      $region40: #{tpu_custom_call.1} parent=5 // pred_fallthru
        _
      %149 = shalt.err (0)
      %s151 = sshll.u32 %s143, 4
      %s152 = int_to_ptr.vmem [resolvable:$true] %s151
      %154 = dma.hbm_to_vmem [thread:$0]  %s142, 16, %s152, [#allocation3]
    $region6: #{tpu_custom_call.1} parent=1 // loop_footer
      %s18 = sadd.s32 1, %s14
    $region7: #{tpu_custom_call.1} parent=1 // loop_footer_branch
      %13 = sbr.rel target = $region3
    $region8: #{tpu_custom_call.1} parent=1 // loop_exit
      _
    %s155 = smul.u32 16, 1
    %s156 = sshll.u32 %s155, 4
    %157 = dma.done [#allocation3], %s156
    %v158 = vld [vmem:[#allocation2] sm:$0xff]
    %v159 = vld [vmem:[#allocation2 + $0x8] sm:$0xff]
    %v160 = vmul.f32 %v158, 5.656854
    %v161 = vmul.f32 %v159, 5.656854
    %162 = vst [vmem:[#allocation6] sm:$0xff] %v160
    %163 = vst [vmem:[#allocation6 + $0x8] sm:$0xff] %v161
    // Predicated region
    $region41: #{tpu_custom_call.1} parent=1 // pred_check
      _
    $region42: #{tpu_custom_call.1} parent=1 // pred_check_branch
      %165 = sbr.rel (0) target = $region44
    $region43: #{tpu_custom_call.1} parent=1 // pred_region
      %s167 = ssub.s32 256, 256
      %168 = vsyncadd [#allocation7], %s167
      %s169 = sshll.u32 [#allocation6], 4
      %s170 = int_to_ptr.vmem [resolvable:$true] %s169
      %175 = dma.vmem_to_hbm [thread:$0]  %s170, 256, %s2, [#allocation7], 128, 128, 8
    $region44: #{tpu_custom_call.1} parent=1 // pred_fallthru
      _
    // Predicated region
    $region45: #{tpu_custom_call.1} parent=1 // pred_check
      _
    $region46: #{tpu_custom_call.1} parent=1 // pred_check_branch
      %177 = sbr.rel (0) target = $region48
    $region47: #{tpu_custom_call.1} parent=1 // pred_region
      %178 = dma.done [#allocation7], 256
    $region48: #{tpu_custom_call.1} parent=1 // pred_fallthru
      _
    %179 = vsyncpa [#allocation7], 1
  %180 = vsyncmov [#allocation3]
  %s181 = vpop.sfrf %180
  %p182 = scmp.eq.s32.totalorder %s181, 0
  %p183 = pneg %p182
  %185 = shalt.err (%p183)

</llo_original>
